<compile_context>
chip_gen: v5e
topology: v5e:2x2
jax: 0.10.0
libtpu: 0.0.40
codegen_flags: <defaults>
</compile_context>

<pallas_src>
import functools

import jax
import jax.numpy as jnp
from jax.experimental import pallas as pl
from jax.experimental.pallas import tpu as pltpu


TB_MAX = 2048                 # large-batch row tile (fits easily in scoped VMEM)
SMALL_BATCH_XLA_THRESHOLD = 512


def _ppo_policy_kernel(x_ref, w1_ref, b1_ref, w2_ref, b2_ref, wh_ref, bh_ref,
                       logits_ref, value_ref, *, n_actions):
    # Cast activations to the (bf16) weight dtype for MXU-native matmuls;
    # accumulate in f32, keep tanh + bias math in f32.
    x = x_ref[...].astype(w1_ref.dtype)

    # Layer 1 (both branches): (TB, obs) @ (obs, 2H) -> (TB, 2H)
    h = jnp.tanh(
        jnp.dot(x, w1_ref[...], preferred_element_type=jnp.float32) + b1_ref[...]
    )

    # Layer 2 (block-diagonal, both branches): (TB, 2H) @ (2H, 2H) -> (TB, 2H)
    h = jnp.tanh(
        jnp.dot(h.astype(w2_ref.dtype), w2_ref[...],
                preferred_element_type=jnp.float32) + b2_ref[...]
    )

    # Fused heads: (TB, 2H) @ (2H, A+1) -> (TB, A+1), then split into the two
    # narrow outputs (in-kernel vst is masked, but HBM rows stay dense/tiny).
    head = (
        jnp.dot(h.astype(wh_ref.dtype), wh_ref[...],
                preferred_element_type=jnp.float32) + bh_ref[...]
    )
    logits_ref[...] = head[:, :n_actions].astype(logits_ref.dtype)
    value_ref[...] = head[:, n_actions:n_actions + 1].astype(value_ref.dtype)


def fuse_params(p, n_actions, *, weight_dtype=jnp.bfloat16):
    """Pre-concatenate per-layer params into the fused kernel layout."""
    H = p["w1p"].shape[1]

    # Layer 1: [w1p | w1v] -> (obs_dim, 2H)
    w1_cat = jnp.concatenate([p["w1p"], p["w1v"]], axis=1).astype(weight_dtype)
    b1_cat = jnp.concatenate([p["b1p"], p["b1v"]])[None, :].astype(jnp.float32)

    # Layer 2: block-diagonal [[w2p, 0], [0, w2v]] -> (2H, 2H)
    z = jnp.zeros((H, H), p["w2p"].dtype)
    w2_cat = jnp.block([[p["w2p"], z], [z, p["w2v"]]]).astype(weight_dtype)
    b2_cat = jnp.concatenate([p["b2p"], p["b2v"]])[None, :].astype(jnp.float32)

    # Heads: rows 0:H feed action_net, rows H:2H feed value_net.
    HW = n_actions + 1
    wh = jnp.zeros((2 * H, HW), jnp.float32)
    wh = wh.at[:H, :n_actions].set(p["wa"])
    wh = wh.at[H:, n_actions].set(p["wv"][:, 0])
    bh = jnp.zeros((1, HW), jnp.float32)
    bh = bh.at[0, :n_actions].set(p["ba"])
    bh = bh.at[0, n_actions].set(p["bv"][0])

    return {"w1": w1_cat, "b1": b1_cat, "w2": w2_cat, "b2": b2_cat,
            "wh": wh.astype(weight_dtype), "bh": bh}


def _fused_xla_forward(x, fused, n_actions):
    """Plain XLA path for small batches (launch-latency bound regime)."""
    wd = fused["w1"].dtype
    h = jnp.tanh(jnp.dot(x.astype(wd), fused["w1"],
                         preferred_element_type=jnp.float32) + fused["b1"])
    h = jnp.tanh(jnp.dot(h.astype(wd), fused["w2"],
                         preferred_element_type=jnp.float32) + fused["b2"])
    head = jnp.dot(h.astype(wd), fused["wh"],
                   preferred_element_type=jnp.float32) + fused["bh"]
    return head[:, :n_actions], head[:, n_actions:n_actions + 1]


def _pick_tb(B):
    """Row-tile size: amortize per-step overhead, but keep >=2 grid steps for
    moderately sized batches so v7x's two TensorCores both engage."""
    if B <= 8:
        return 8
    half = -(-B // 2)                      # ceil(B / 2)
    tb = ((half + 7) // 8) * 8             # round up to sublane multiple
    return min(tb, TB_MAX)


def ppo_onnxable_policy_forward(x, fused, n_actions, *, force_pallas=False):
    """Full PPO policy forward.

    x      : (B, obs_dim) float32
    fused  : dict from fuse_params
    returns: (action_logits (B, n_actions), value (B, 1)) float32
    """
    B, obs_dim = x.shape
    if B < SMALL_BATCH_XLA_THRESHOLD and not force_pallas:
        return _fused_xla_forward(x, fused, n_actions)

    H2 = fused["w1"].shape[1]
    HW = fused["wh"].shape[1]
    TB = _pick_tb(B)
    grid = (pl.cdiv(B, TB),)               # ragged last tile handled by Pallas

    kernel = functools.partial(_ppo_policy_kernel, n_actions=n_actions)
    logits, value = pl.pallas_call(
        kernel,
        out_shape=(jax.ShapeDtypeStruct((B, n_actions), jnp.float32),
                   jax.ShapeDtypeStruct((B, 1), jnp.float32)),
        grid=grid,
        in_specs=[
            pl.BlockSpec((TB, obs_dim), lambda i: (i, 0)),   # x tile
            pl.BlockSpec((obs_dim, H2), lambda i: (0, 0)),   # W1_cat (resident)
            pl.BlockSpec((1, H2), lambda i: (0, 0)),         # b1_cat
            pl.BlockSpec((H2, H2), lambda i: (0, 0)),        # W2_cat (block-diag)
            pl.BlockSpec((1, H2), lambda i: (0, 0)),         # b2_cat
            pl.BlockSpec((H2, HW), lambda i: (0, 0)),        # W_head (narrow)
            pl.BlockSpec((1, HW), lambda i: (0, 0)),         # b_head
        ],
        out_specs=(pl.BlockSpec((TB, n_actions), lambda i: (i, 0)),
                   pl.BlockSpec((TB, 1), lambda i: (i, 0))),
        compiler_params=pltpu.CompilerParams(
            dimension_semantics=("parallel",)),
    )(x, fused["w1"], fused["b1"], fused["w2"], fused["b2"],
      fused["wh"], fused["bh"])
    return logits, value


def init_params(key, obs_dim, hidden, n_actions):
    """Deterministic synthetic per-layer params (matches the module's shapes)."""
    ks = jax.random.split(key, 10)
    scale = 0.1

    def lin(k, fan_in, fan_out):
        return scale * jax.random.normal(k, (fan_in, fan_out), jnp.float32)

    return {
        # extractor: policy branch
        "w1p": lin(ks[0], obs_dim, hidden),
        "b1p": 0.01 * jax.random.normal(ks[6], (hidden,), jnp.float32),
        "w2p": lin(ks[1], hidden, hidden),
        "b2p": 0.01 * jax.random.normal(ks[7], (hidden,), jnp.float32),
        # extractor: value branch
        "w1v": lin(ks[2], obs_dim, hidden),
        "b1v": 0.01 * jax.random.normal(ks[8], (hidden,), jnp.float32),
        "w2v": lin(ks[3], hidden, hidden),
        "b2v": 0.01 * jax.random.normal(ks[9], (hidden,), jnp.float32),
        # action_net
        "wa": lin(ks[4], hidden, n_actions),
        "ba": jnp.zeros((n_actions,), jnp.float32),
        # value_net
        "wv": lin(ks[5], hidden, 1),
        "bv": jnp.zeros((1,), jnp.float32),
    }


def _reference_forward(x, p):
    """Pure-JAX f32 reference of the unfused forward pass (correctness oracle)."""
    h = jnp.tanh(x @ p["w1p"] + p["b1p"])
    action_hidden = jnp.tanh(h @ p["w2p"] + p["b2p"])
    g = jnp.tanh(x @ p["w1v"] + p["b1v"])
    value_hidden = jnp.tanh(g @ p["w2v"] + p["b2v"])
    return action_hidden @ p["wa"] + p["ba"], value_hidden @ p["wv"] + p["bv"]


if __name__ == "__main__":
    key = jax.random.PRNGKey(0)
    k_x, k_p = jax.random.split(key)

    obs_dim, hidden, n_actions = 32, 64, 4
    params = init_params(k_p, obs_dim, hidden, n_actions)
    fused = fuse_params(params, n_actions)

    # bf16 matmul operands (f32 accumulation) => relaxed tolerance vs f32 ref.
    atol = rtol = 3e-2

    for batch in (8, 37):   # 37 exercises the ragged (masked) last tile
        kx = jax.random.fold_in(k_x, batch)
        x = jax.random.normal(kx, (batch, obs_dim), jnp.float32)

        actions, value = ppo_onnxable_policy_forward(
            x, fused, n_actions, force_pallas=True)
        jax.block_until_ready((actions, value))

        ref_actions, ref_value = _reference_forward(x, params)
        assert actions.shape == (batch, n_actions)
        assert value.shape == (batch, 1)
        assert jnp.allclose(actions, ref_actions, atol=atol, rtol=rtol)
        assert jnp.allclose(value, ref_value, atol=atol, rtol=rtol)

        # Default dispatch at small B uses the plain-XLA path; check it too.
        xa, xv = ppo_onnxable_policy_forward(x, fused, n_actions)
        jax.block_until_ready((xa, xv))
        assert jnp.allclose(xa, ref_actions, atol=atol, rtol=rtol)
        assert jnp.allclose(xv, ref_value, atol=atol, rtol=rtol)

    print("KERNEL_OK")
</pallas_src>

<mosaic_0001>
module attributes {stable_mosaic.version = 11 : i64} {
  func.func @_ppo_policy_kernel(%arg0: i32, %arg1: memref<8x32xf32, #tpu.memory_space<vmem>>, %arg2: memref<32x128xbf16, #tpu.memory_space<vmem>>, %arg3: memref<1x128xf32, #tpu.memory_space<vmem>>, %arg4: memref<128x128xbf16, #tpu.memory_space<vmem>>, %arg5: memref<1x128xf32, #tpu.memory_space<vmem>>, %arg6: memref<128x5xbf16, #tpu.memory_space<vmem>>, %arg7: memref<1x5xf32, #tpu.memory_space<vmem>>, %arg8: memref<8x4xf32, #tpu.memory_space<vmem>>, %arg9: memref<8x1xf32, #tpu.memory_space<vmem>>) attributes {dimension_semantics = [#tpu.dimension_semantics<parallel>], iteration_bounds = array<i64: 1>, scalar_prefetch = 0 : i64, scratch_operands = 0 : i64, tpu.core_type = #tpu.core_type<tc>, window_params = [{transform_indices = @transform_0, window_bounds = array<i64: 8, 32>}, {pipeline_mode = #tpu.pipeline_mode<synchronous>, transform_indices = @transform_1, window_bounds = array<i64: 32, 128>}, {pipeline_mode = #tpu.pipeline_mode<synchronous>, transform_indices = @transform_2, window_bounds = array<i64: 1, 128>}, {pipeline_mode = #tpu.pipeline_mode<synchronous>, transform_indices = @transform_3, window_bounds = array<i64: 128, 128>}, {pipeline_mode = #tpu.pipeline_mode<synchronous>, transform_indices = @transform_4, window_bounds = array<i64: 1, 128>}, {pipeline_mode = #tpu.pipeline_mode<synchronous>, transform_indices = @transform_5, window_bounds = array<i64: 128, 5>}, {pipeline_mode = #tpu.pipeline_mode<synchronous>, transform_indices = @transform_6, window_bounds = array<i64: 1, 5>}, {transform_indices = @transform_7, window_bounds = array<i64: 8, 4>}, {transform_indices = @transform_8, window_bounds = array<i64: 8, 1>}]} {
    %c0 = arith.constant 0 : index
    %c0_0 = arith.constant 0 : index
    %0 = vector.load %arg1[%c0, %c0_0] : memref<8x32xf32, #tpu.memory_space<vmem>>, vector<8x32xf32>
    %1 = arith.truncf %0 : vector<8x32xf32> to vector<8x32xbf16>
    %c0_1 = arith.constant 0 : index
    %c0_2 = arith.constant 0 : index
    %2 = vector.load %arg2[%c0_1, %c0_2] : memref<32x128xbf16, #tpu.memory_space<vmem>>, vector<32x128xbf16>
    %cst = arith.constant dense<0.000000e+00> : vector<8x128xf32>
    %3 = tpu.matmul %1, %2, %cst {dimension_numbers = #tpu.dot_dimension_numbers<[1], [0], [0], [1], [0, 0, 1, 1], [], []>} : vector<8x32xbf16>, vector<32x128xbf16>, vector<8x128xf32> -> vector<8x128xf32>
    %c0_3 = arith.constant 0 : index
    %c0_4 = arith.constant 0 : index
    %4 = vector.load %arg3[%c0_3, %c0_4] : memref<1x128xf32, #tpu.memory_space<vmem>>, vector<1x128xf32>
    %5 = vector.broadcast %4 : vector<1x128xf32> to vector<8x128xf32>
    %6 = arith.addf %3, %5 : vector<8x128xf32>
    %7 = math.tanh %6 : vector<8x128xf32>
    %8 = arith.truncf %7 : vector<8x128xf32> to vector<8x128xbf16>
    %c0_5 = arith.constant 0 : index
    %c0_6 = arith.constant 0 : index
    %9 = vector.load %arg4[%c0_5, %c0_6] : memref<128x128xbf16, #tpu.memory_space<vmem>>, vector<128x128xbf16>
    %cst_7 = arith.constant dense<0.000000e+00> : vector<8x128xf32>
    %10 = tpu.matmul %8, %9, %cst_7 {dimension_numbers = #tpu.dot_dimension_numbers<[1], [0], [0], [1], [0, 0, 1, 1], [], []>} : vector<8x128xbf16>, vector<128x128xbf16>, vector<8x128xf32> -> vector<8x128xf32>
    %c0_8 = arith.constant 0 : index
    %c0_9 = arith.constant 0 : index
    %11 = vector.load %arg5[%c0_8, %c0_9] : memref<1x128xf32, #tpu.memory_space<vmem>>, vector<1x128xf32>
    %12 = vector.broadcast %11 : vector<1x128xf32> to vector<8x128xf32>
    %13 = arith.addf %10, %12 : vector<8x128xf32>
    %14 = math.tanh %13 : vector<8x128xf32>
    %15 = arith.truncf %14 : vector<8x128xf32> to vector<8x128xbf16>
    %c0_10 = arith.constant 0 : index
    %c0_11 = arith.constant 0 : index
    %16 = vector.load %arg6[%c0_10, %c0_11] : memref<128x5xbf16, #tpu.memory_space<vmem>>, vector<128x5xbf16>
    %cst_12 = arith.constant dense<0.000000e+00> : vector<8x5xf32>
    %17 = tpu.matmul %15, %16, %cst_12 {dimension_numbers = #tpu.dot_dimension_numbers<[1], [0], [0], [1], [0, 0, 1, 1], [], []>} : vector<8x128xbf16>, vector<128x5xbf16>, vector<8x5xf32> -> vector<8x5xf32>
    %c0_13 = arith.constant 0 : index
    %c0_14 = arith.constant 0 : index
    %18 = vector.load %arg7[%c0_13, %c0_14] : memref<1x5xf32, #tpu.memory_space<vmem>>, vector<1x5xf32>
    %19 = vector.broadcast %18 : vector<1x5xf32> to vector<8x5xf32>
    %20 = arith.addf %17, %19 : vector<8x5xf32>
    %21 = vector.extract_strided_slice %20 {offsets = [0, 0], sizes = [8, 4], strides = [1, 1]} : vector<8x5xf32> to vector<8x4xf32>
    %c0_15 = arith.constant 0 : index
    %c0_16 = arith.constant 0 : index
    %22 = vector.load %arg8[%c0_15, %c0_16] : memref<8x4xf32, #tpu.memory_space<vmem>>, vector<8x4xf32>
    tpu.vector_store %arg8[%c0_15, %c0_16], %21 {strides = array<i32>} : memref<8x4xf32, #tpu.memory_space<vmem>>, vector<8x4xf32>,
    %23 = vector.extract_strided_slice %20 {offsets = [0, 4], sizes = [8, 1], strides = [1, 1]} : vector<8x5xf32> to vector<8x1xf32>
    %c0_17 = arith.constant 0 : index
    %c0_18 = arith.constant 0 : index
    %24 = vector.load %arg9[%c0_17, %c0_18] : memref<8x1xf32, #tpu.memory_space<vmem>>, vector<8x1xf32>
    tpu.vector_store %arg9[%c0_17, %c0_18], %23 {strides = array<i32>} : memref<8x1xf32, #tpu.memory_space<vmem>>, vector<8x1xf32>,
    return
  }
  func.func @transform_0(%arg0: i32) -> (i32, i32) {
    %c0_i32 = arith.constant 0 : i32
    %c0_i32_0 = arith.constant 0 : i32
    return %arg0, %c0_i32 : i32, i32
  }
  func.func @transform_1(%arg0: i32) -> (i32, i32) {
    %c0_i32 = arith.constant 0 : i32
    %c0_i32_0 = arith.constant 0 : i32
    %c0_i32_1 = arith.constant 0 : i32
    return %c0_i32, %c0_i32_0 : i32, i32
  }
  func.func @transform_2(%arg0: i32) -> (i32, i32) {
    %c0_i32 = arith.constant 0 : i32
    %c0_i32_0 = arith.constant 0 : i32
    %c0_i32_1 = arith.constant 0 : i32
    return %c0_i32, %c0_i32_0 : i32, i32
  }
  func.func @transform_3(%arg0: i32) -> (i32, i32) {
    %c0_i32 = arith.constant 0 : i32
    %c0_i32_0 = arith.constant 0 : i32
    %c0_i32_1 = arith.constant 0 : i32
    return %c0_i32, %c0_i32_0 : i32, i32
  }
  func.func @transform_4(%arg0: i32) -> (i32, i32) {
    %c0_i32 = arith.constant 0 : i32
    %c0_i32_0 = arith.constant 0 : i32
    %c0_i32_1 = arith.constant 0 : i32
    return %c0_i32, %c0_i32_0 : i32, i32
  }
  func.func @transform_5(%arg0: i32) -> (i32, i32) {
    %c0_i32 = arith.constant 0 : i32
    %c0_i32_0 = arith.constant 0 : i32
    %c0_i32_1 = arith.constant 0 : i32
    return %c0_i32, %c0_i32_0 : i32, i32
  }
  func.func @transform_6(%arg0: i32) -> (i32, i32) {
    %c0_i32 = arith.constant 0 : i32
    %c0_i32_0 = arith.constant 0 : i32
    %c0_i32_1 = arith.constant 0 : i32
    return %c0_i32, %c0_i32_0 : i32, i32
  }
  func.func @transform_7(%arg0: i32) -> (i32, i32) {
    %c0_i32 = arith.constant 0 : i32
    %c0_i32_0 = arith.constant 0 : i32
    return %arg0, %c0_i32 : i32, i32
  }
  func.func @transform_8(%arg0: i32) -> (i32, i32) {
    %c0_i32 = arith.constant 0 : i32
    %c0_i32_0 = arith.constant 0 : i32
    return %arg0, %c0_i32 : i32, i32
  }
}

</mosaic_0001>

<llo_original>
// kernel: tpu_custom_call.1
$region0: #{tpu_custom_call.1}
  #allocation0 [shape = 'u32[]', space=smem, size = 0x4, offset = 0x4, fixed_abs, tag = 'smem constant byte address 0x4 - core index']
  #allocation1 [shape = 'u32[72,128]{1,0:T(1,128)}', space=vmem, size = 0x9000, scoped, tag = 'internal scratch']
  %s0 = inlined_call_operand.hbm [shape: f32[8,32], index: 0, kind: input, shape index: {}]
  %s1 = inlined_call_operand.hbm [shape: bf16[32,128], index: 1, kind: input, shape index: {}]
  %s2 = inlined_call_operand.vmem [shape: f32[1,128], index: 2, kind: input, shape index: {}]
  %s3 = inlined_call_operand.vmem [shape: bf16[128,128], index: 3, kind: input, shape index: {}]
  %s4 = inlined_call_operand.vmem [shape: f32[1,128], index: 4, kind: input, shape index: {}]
  %s5 = inlined_call_operand.vmem [shape: bf16[128,5], index: 5, kind: input, shape index: {}]
  %s6 = inlined_call_operand.vmem [shape: f32[1,5], index: 6, kind: input, shape index: {}]
  %s7 = inlined_call_operand.vmem [shape: f32[8,4], index: 7, kind: output, shape index: {0}]
  %s8 = inlined_call_operand.vmem [shape: f32[8,1], index: 8, kind: output, shape index: {1}]
  %9 = xla_tuple %s7, %s8
  %s10 = sld [smem:[#allocation0]]
  $region54: #{tpu_custom_call.1} parent=0
    _
  %s12 = ssub.s32 1, %s10
  %s13 = scalar_select 0, %s12, %s10
  $region1: #{tpu_custom_call.1} parent=0
    #allocation2 [shape = 'u8[4096]{0}', space=vmem, size = 0x1000, scoped, tag = 'input window, operand 0, single buffered']
    #allocation3 [shape = 's32[1]{0}', space=sflag, size = 0x4, scoped, tag = 'scoped memory for tpu_custom_call.1']
    #allocation4 [shape = 'u8[8192]{0}', space=vmem, size = 0x2000, scoped, tag = 'input window, operand 1, single buffered']
    #allocation5 [shape = 's32[1]{0}', space=sflag, size = 0x4, scoped, tag = 'scoped memory for tpu_custom_call.1']
    %14 = vsyncpa [#allocation3], 0
    %15 = vsyncpa [#allocation5], 0
    // Predicated region
    $region2: #{tpu_custom_call.1} parent=1 // pred_check
      _
    $region3: #{tpu_custom_call.1} parent=1 // pred_check_branch
      %17 = sbr.rel (0) target = $region5
    $region4: #{tpu_custom_call.1} parent=1 // pred_region
      %19 = vsyncadd [#allocation3], 0
      %s21 = sshll.u32 %s0, 4
      %s22 = int_to_ptr.hbm [resolvable:$true] %s21
      %s23 = sshll.u32 [#allocation2], 4
      %s24 = int_to_ptr.vmem [resolvable:$true] %s23
      %26 = dma.hbm_to_vmem [thread:$0]  %s22, 128, %s24, [#allocation3]
    $region5: #{tpu_custom_call.1} parent=1 // pred_fallthru
      _
    // Predicated region
    $region6: #{tpu_custom_call.1} parent=1 // pred_check
      _
    $region7: #{tpu_custom_call.1} parent=1 // pred_check_branch
      %28 = sbr.rel (0) target = $region9
    $region8: #{tpu_custom_call.1} parent=1 // pred_region
      %30 = vsyncadd [#allocation5], 0
      %s31 = sshll.u32 %s1, 4
      %s32 = int_to_ptr.hbm [resolvable:$true] %s31
      %s33 = sshll.u32 [#allocation4], 4
      %s34 = int_to_ptr.vmem [resolvable:$true] %s33
      %39 = dma.hbm_to_vmem [thread:$0]  %s32, 256, %s34, [#allocation5], 64, 64, 4
    $region9: #{tpu_custom_call.1} parent=1 // pred_fallthru
      _
    // Predicated region
    $region10: #{tpu_custom_call.1} parent=1 // pred_check
      _
    $region11: #{tpu_custom_call.1} parent=1 // pred_check_branch
      %41 = sbr.rel (0) target = $region13
    $region12: #{tpu_custom_call.1} parent=1 // pred_region
      _
    $region13: #{tpu_custom_call.1} parent=1 // pred_fallthru
      _
    // Predicated region
    $region14: #{tpu_custom_call.1} parent=1 // pred_check
      _
    $region15: #{tpu_custom_call.1} parent=1 // pred_check_branch
      %43 = sbr.rel (0) target = $region17
    $region16: #{tpu_custom_call.1} parent=1 // pred_region
      _
    $region17: #{tpu_custom_call.1} parent=1 // pred_fallthru
      _
    // Predicated region
    $region18: #{tpu_custom_call.1} parent=1 // pred_check
      _
    $region19: #{tpu_custom_call.1} parent=1 // pred_check_branch
      %45 = sbr.rel (0) target = $region21
    $region20: #{tpu_custom_call.1} parent=1 // pred_region
      _
    $region21: #{tpu_custom_call.1} parent=1 // pred_fallthru
      _
    // Predicated region
    $region22: #{tpu_custom_call.1} parent=1 // pred_check
      _
    $region23: #{tpu_custom_call.1} parent=1 // pred_check_branch
      %47 = sbr.rel (0) target = $region25
    $region24: #{tpu_custom_call.1} parent=1 // pred_region
      _
    $region25: #{tpu_custom_call.1} parent=1 // pred_fallthru
      _
    // Predicated region
    $region26: #{tpu_custom_call.1} parent=1 // pred_check
      _
    $region27: #{tpu_custom_call.1} parent=1 // pred_check_branch
      %49 = sbr.rel (0) target = $region29
    $region28: #{tpu_custom_call.1} parent=1 // pred_region
      _
    $region29: #{tpu_custom_call.1} parent=1 // pred_fallthru
      _
    // Predicated region
    $region30: #{tpu_custom_call.1} parent=1 // pred_check
      _
    $region31: #{tpu_custom_call.1} parent=1 // pred_check_branch
      %51 = sbr.rel (0) target = $region33
    $region32: #{tpu_custom_call.1} parent=1 // pred_region
      %53 = dma.done [#allocation3], 128
    $region33: #{tpu_custom_call.1} parent=1 // pred_fallthru
      _
    // Predicated region
    $region34: #{tpu_custom_call.1} parent=1 // pred_check
      _
    $region35: #{tpu_custom_call.1} parent=1 // pred_check_branch
      %55 = sbr.rel (0) target = $region37
    $region36: #{tpu_custom_call.1} parent=1 // pred_region
      %57 = dma.done [#allocation5], 256
    $region37: #{tpu_custom_call.1} parent=1 // pred_fallthru
      _
    %v59 = vld [vmem:[#allocation2] sm:$0xff]
    %v60 = vpack.c.bf16 %v59, %v59
    %v61 = vld [vmem:[#allocation4] sm:$0xf]
    %v62 = vld [vmem:[#allocation4 + $0x4] sm:$0xf]
    %v63 = vld [vmem:[#allocation4 + $0x8] sm:$0xf]
    %v64 = vld [vmem:[#allocation4 + $0xc] sm:$0xf]
    %v65 = vld [vmem:[%s2] sm:$0x1]
    %v67 = vperm.slane %v65, 0
    %v73 = vunpack.c.l.b16 %v61
    %v74 = vunpack.c.l.b16 %v62
    %v75 = vunpack.c.l.b16 %v63
    %v76 = vunpack.c.l.b16 %v64
    %v77 = vpack.c.b16 %v74, %v73
    %v78 = vpack.c.b16 %v76, %v75
    %vm81 = vcmask 261120
    %v83 = vsel %vm81, %v60, 0
    %85 = vmatpush.bf16.msra.mxu0 0
    %86 = vmatpush.bf16.msra.mxu0 0
    %87 = vmatpush.bf16.msra.mxu0 0
    %88 = vmatpush.bf16.msra.mxu0 0
    %89 = vmatpush.bf16.msra.mxu0 0
    %90 = vmatpush.bf16.msra.mxu0 0
    %91 = vmatpush.bf16.msra.mxu0 %v78
    %92 = vmatpush.bf16.msra.mxu0 %v77
    %93 = vmatmul.bf16.gmra.mxu0 %v83
    %v94 = vpop.f32.mrf.mxu0
    %v95 = vadd.f32 %v67, %v94
    %v96 = vpop.f32.mrf.mxu0
    %97 = vdwg.mxu0
    %v98 = vtanh.pop %v95
    %v99 = vpack.c.bf16 %v98, %v98
    %v100 = vld [vmem:[%s3] sm:$0xf]
    %v101 = vld [vmem:[%s3 + $0x4] sm:$0xf]
    %v102 = vld [vmem:[%s3 + $0x8] sm:$0xf]
    %v103 = vld [vmem:[%s3 + $0xc] sm:$0xf]
    %v104 = vld [vmem:[%s3 + $0x10] sm:$0xf]
    %v105 = vld [vmem:[%s3 + $0x14] sm:$0xf]
    %v106 = vld [vmem:[%s3 + $0x18] sm:$0xf]
    %v107 = vld [vmem:[%s3 + $0x1c] sm:$0xf]
    %v108 = vld [vmem:[%s3 + $0x20] sm:$0xf]
    %v109 = vld [vmem:[%s3 + $0x24] sm:$0xf]
    %v110 = vld [vmem:[%s3 + $0x28] sm:$0xf]
    %v111 = vld [vmem:[%s3 + $0x2c] sm:$0xf]
    %v112 = vld [vmem:[%s3 + $0x30] sm:$0xf]
    %v113 = vld [vmem:[%s3 + $0x34] sm:$0xf]
    %v114 = vld [vmem:[%s3 + $0x38] sm:$0xf]
    %v115 = vld [vmem:[%s3 + $0x3c] sm:$0xf]
    %v116 = vld [vmem:[%s4] sm:$0x1]
    %v118 = vperm.slane %v116, 0
    %v136 = vunpack.c.l.b16 %v100
    %v137 = vunpack.c.l.b16 %v101
    %v138 = vunpack.c.l.b16 %v102
    %v139 = vunpack.c.l.b16 %v103
    %v140 = vunpack.c.l.b16 %v104
    %v141 = vunpack.c.l.b16 %v105
    %v142 = vunpack.c.l.b16 %v106
    %v143 = vunpack.c.l.b16 %v107
    %v144 = vunpack.c.l.b16 %v108
    %v145 = vunpack.c.l.b16 %v109
    %v146 = vunpack.c.l.b16 %v110
    %v147 = vunpack.c.l.b16 %v111
    %v148 = vunpack.c.l.b16 %v112
    %v149 = vunpack.c.l.b16 %v113
    %v150 = vunpack.c.l.b16 %v114
    %v151 = vunpack.c.l.b16 %v115
    %v152 = vpack.c.b16 %v137, %v136
    %v153 = vpack.c.b16 %v139, %v138
    %v154 = vpack.c.b16 %v141, %v140
    %v155 = vpack.c.b16 %v143, %v142
    %v156 = vpack.c.b16 %v145, %v144
    %v157 = vpack.c.b16 %v147, %v146
    %v158 = vpack.c.b16 %v149, %v148
    %v159 = vpack.c.b16 %v151, %v150
    %168 = vmatpush.bf16.msra.mxu0 %v159
    %169 = vmatpush.bf16.msra.mxu0 %v158
    %170 = vmatpush.bf16.msra.mxu0 %v157
    %171 = vmatpush.bf16.msra.mxu0 %v156
    %172 = vmatpush.bf16.msra.mxu0 %v155
    %173 = vmatpush.bf16.msra.mxu0 %v154
    %174 = vmatpush.bf16.msra.mxu0 %v153
    %175 = vmatpush.bf16.msra.mxu0 %v152
    %176 = vmatmul.bf16.gmra.mxu0 %v99
    %v177 = vpop.f32.mrf.mxu0
    %v178 = vadd.f32 %v118, %v177
    %v179 = vpop.f32.mrf.mxu0
    %180 = vdwg.mxu0
    %v181 = vtanh.pop %v178
    %v182 = vpack.c.bf16 %v181, %v181
    %v183 = vld [vmem:[%s5] sm:$0xf]
    %v184 = vld [vmem:[%s5 + $0x4] sm:$0xf]
    %v185 = vld [vmem:[%s5 + $0x8] sm:$0xf]
    %v186 = vld [vmem:[%s5 + $0xc] sm:$0xf]
    %v187 = vld [vmem:[%s5 + $0x10] sm:$0xf]
    %v188 = vld [vmem:[%s5 + $0x14] sm:$0xf]
    %v189 = vld [vmem:[%s5 + $0x18] sm:$0xf]
    %v190 = vld [vmem:[%s5 + $0x1c] sm:$0xf]
    %v191 = vld [vmem:[%s5 + $0x20] sm:$0xf]
    %v192 = vld [vmem:[%s5 + $0x24] sm:$0xf]
    %v193 = vld [vmem:[%s5 + $0x28] sm:$0xf]
    %v194 = vld [vmem:[%s5 + $0x2c] sm:$0xf]
    %v195 = vld [vmem:[%s5 + $0x30] sm:$0xf]
    %v196 = vld [vmem:[%s5 + $0x34] sm:$0xf]
    %v197 = vld [vmem:[%s5 + $0x38] sm:$0xf]
    %v198 = vld [vmem:[%s5 + $0x3c] sm:$0xf]
    %v199 = vld [vmem:[%s6] sm:$0x1]
    %v201 = vperm.slane %v199, 0
    %v219 = vunpack.c.l.b16 %v183
    %v220 = vunpack.c.l.b16 %v184
    %v221 = vunpack.c.l.b16 %v185
    %v222 = vunpack.c.l.b16 %v186
    %v223 = vunpack.c.l.b16 %v187
    %v224 = vunpack.c.l.b16 %v188
    %v225 = vunpack.c.l.b16 %v189
    %v226 = vunpack.c.l.b16 %v190
    %v227 = vunpack.c.l.b16 %v191
    %v228 = vunpack.c.l.b16 %v192
    %v229 = vunpack.c.l.b16 %v193
    %v230 = vunpack.c.l.b16 %v194
    %v231 = vunpack.c.l.b16 %v195
    %v232 = vunpack.c.l.b16 %v196
    %v233 = vunpack.c.l.b16 %v197
    %v234 = vunpack.c.l.b16 %v198
    %v235 = vpack.c.b16 %v220, %v219
    %v236 = vpack.c.b16 %v222, %v221
    %v237 = vpack.c.b16 %v224, %v223
    %v238 = vpack.c.b16 %v226, %v225
    %v239 = vpack.c.b16 %v228, %v227
    %v240 = vpack.c.b16 %v230, %v229
    %v241 = vpack.c.b16 %v232, %v231
    %v242 = vpack.c.b16 %v234, %v233
    %251 = vmatpush.bf16.msra.mxu0 %v242
    %252 = vmatpush.bf16.msra.mxu0 %v241
    %253 = vmatpush.bf16.msra.mxu0 %v240
    %254 = vmatpush.bf16.msra.mxu0 %v239
    %255 = vmatpush.bf16.msra.mxu0 %v238
    %256 = vmatpush.bf16.msra.mxu0 %v237
    %257 = vmatpush.bf16.msra.mxu0 %v236
    %258 = vmatpush.bf16.msra.mxu0 %v235
    %259 = vmatmul.bf16.gmra.mxu0 %v182
    %v260 = vpop.f32.mrf.mxu0
    %v261 = vadd.f32 %v201, %v260
    %v262 = vpop.f32.mrf.mxu0
    %263 = vdwg.mxu0
    %vm264 = vcmask 31744
    %265 = vst.msk [vmem:[%s7] sm:$0xff] %vm264, %v261
    %267 = vrot.lane.b32.xlu0 %v261, 124
    %v268 = vpop.permute.xlu0 %267
    %vm270 = vcmask 7168
    %271 = vst.msk [vmem:[%s8] sm:$0xff] %vm270, %v268
    // Predicated region
    $region38: #{tpu_custom_call.1} parent=1 // pred_check
      _
    $region39: #{tpu_custom_call.1} parent=1 // pred_check_branch
      %273 = sbr.rel (0) target = $region41
    $region40: #{tpu_custom_call.1} parent=1 // pred_region
      _
    $region41: #{tpu_custom_call.1} parent=1 // pred_fallthru
      _
    // Predicated region
    $region42: #{tpu_custom_call.1} parent=1 // pred_check
      _
    $region43: #{tpu_custom_call.1} parent=1 // pred_check_branch
      %275 = sbr.rel (0) target = $region45
    $region44: #{tpu_custom_call.1} parent=1 // pred_region
      _
    $region45: #{tpu_custom_call.1} parent=1 // pred_fallthru
      _
    // Predicated region
    $region46: #{tpu_custom_call.1} parent=1 // pred_check
      _
    $region47: #{tpu_custom_call.1} parent=1 // pred_check_branch
      %277 = sbr.rel (0) target = $region49
    $region48: #{tpu_custom_call.1} parent=1 // pred_region
      _
    $region49: #{tpu_custom_call.1} parent=1 // pred_fallthru
      _
    // Predicated region
    $region50: #{tpu_custom_call.1} parent=1 // pred_check
      _
    $region51: #{tpu_custom_call.1} parent=1 // pred_check_branch
      %279 = sbr.rel (0) target = $region53
    $region52: #{tpu_custom_call.1} parent=1 // pred_region
      _
    $region53: #{tpu_custom_call.1} parent=1 // pred_fallthru
      _
    %280 = vsyncpa [#allocation3], 1
    %281 = vsyncpa [#allocation5], 1

</llo_original>
